<compile_context>
chip_gen: v6e
topology: v6e:2x2x1
jax: 0.10.0
libtpu: 0.0.40
codegen_flags: <defaults>
</compile_context>

<pallas_src>
import jax
import jax.numpy as jnp
from jax import lax
from jax.experimental import pallas as pl
from jax.experimental.pallas import tpu as pltpu


def _fused_kernel(x_ref, wa_ref, gamma_ref, beta_ref, w2_ref, b2_ref, o_ref):
    F = wa_ref.shape[0]

    # fca (bias ba cancels exactly under BN batch-mean centering):
    #   h = x @ Wa^T, contracted in-kernel -> no wrapper-side transpose of x.
    h = lax.dot_general(
        x_ref[...], wa_ref[...],
        dimension_numbers=(((1,), (1,)), ((), ())),
        preferred_element_type=jnp.float32,
    )                                                    # (N, F)

    # BatchNorm1d training mode: per-feature batch mean / biased var, eps = 1.
    # Batch axis is on sublanes -> cheap XLU sublane reductions.
    n = h.shape[0]
    inv_n = 1.0 / n
    mean = jnp.sum(h, axis=0, keepdims=True) * inv_n     # (1, F)
    centered = h - mean
    var = jnp.sum(centered * centered, axis=0, keepdims=True) * inv_n
    hn = centered * lax.rsqrt(var + 1.0)                 # eps = 1 -> (N, F)

    # BN affine + fc2 (K=4, Nout=1) applied per-feature from SMEM scalars:
    #   y = sum_k (hn[:,k]*gamma[k] + beta[k]) * w2[k] + b2
    # Unrolled VPU scalar-broadcast MACs; keeps the MXU off the critical path.
    acc = (hn[:, 0:1] * gamma_ref[0] + beta_ref[0]) * w2_ref[0, 0]
    for k in range(1, F):
        acc = acc + (hn[:, k:k + 1] * gamma_ref[k] + beta_ref[k]) * w2_ref[0, k]

    o_ref[...] = (acc + b2_ref[0]).astype(o_ref.dtype)   # (N, 1), direct store


def model_a_forward(x, wa, ba, gamma, beta, w2, b2):
    del ba  # cancels exactly under BN batch-mean centering
    N, F = x.shape

    vmem_full = lambda a: pl.BlockSpec(a.shape, lambda: (0,) * a.ndim)
    smem = lambda: pl.BlockSpec(memory_space=pltpu.MemorySpace.SMEM)

    return pl.pallas_call(
        _fused_kernel,
        out_shape=jax.ShapeDtypeStruct((N, 1), jnp.float32),
        in_specs=[vmem_full(x), vmem_full(wa), smem(), smem(), smem(), smem()],
        out_specs=pl.BlockSpec((N, 1), lambda: (0, 0)),
        cost_estimate=pl.CostEstimate(
            flops=2 * F * F * N + 10 * F * N,
            transcendentals=F,
            bytes_accessed=4 * (N * F + F * F + 3 * F + 2 + N),
        ),
    )(x, wa, gamma, beta, w2, b2)


def reference_forward(x, wa, ba, gamma, beta, w2, b2):
    # Unfolded reference: includes ba and applies BN affine explicitly, so the
    # ba-cancellation and in-kernel affine/fc2 path are actually verified.
    h = x @ wa.T + ba
    mean = jnp.mean(h, axis=0, keepdims=True)
    var = jnp.mean((h - mean) ** 2, axis=0, keepdims=True)
    h = (h - mean) / jnp.sqrt(var + 1.0) * gamma + beta
    return h @ w2.T + b2


if __name__ == "__main__":
    key = jax.random.PRNGKey(0)
    k_x, k_wa, k_ba, k_g, k_b, k_w2, k_b2 = jax.random.split(key, 7)

    N, F = 8, 4  # batch, features (fc1/fca: 4->4, fc2: 4->1)

    x = jax.random.normal(k_x, (N, F), dtype=jnp.float32)

    # Parameter shapes match the PyTorch module (Linear weight (out,in), bias
    # (out,), BatchNorm weight/bias (F,)); non-default gamma/beta/ba so the
    # ba-cancellation and affine handling are actually checked.
    wa = jax.random.uniform(k_wa, (F, F), minval=-0.5, maxval=0.5, dtype=jnp.float32)
    ba = jax.random.uniform(k_ba, (F,), minval=-0.5, maxval=0.5, dtype=jnp.float32)
    gamma = jax.random.uniform(k_g, (F,), minval=0.5, maxval=1.5, dtype=jnp.float32)
    beta = jax.random.uniform(k_b, (F,), minval=-0.5, maxval=0.5, dtype=jnp.float32)
    w2 = jax.random.uniform(k_w2, (1, F), minval=-0.5, maxval=0.5, dtype=jnp.float32)
    b2 = jax.random.uniform(k_b2, (1,), minval=-0.5, maxval=0.5, dtype=jnp.float32)

    out = jax.block_until_ready(model_a_forward(x, wa, ba, gamma, beta, w2, b2))

    ref = reference_forward(x, wa, ba, gamma, beta, w2, b2)
    assert out.shape == (N, 1)
    assert jnp.allclose(out, ref, atol=1e-5, rtol=1e-5)

    print("KERNEL_OK")
</pallas_src>

<mosaic_0001>
module attributes {stable_mosaic.version = 11 : i64} {
  func.func @_fused_kernel(%arg0: memref<8x4xf32, #tpu.memory_space<vmem>>, %arg1: memref<4x4xf32, #tpu.memory_space<vmem>>, %arg2: memref<4xf32, #tpu.memory_space<smem>>, %arg3: memref<4xf32, #tpu.memory_space<smem>>, %arg4: memref<1x4xf32, #tpu.memory_space<smem>>, %arg5: memref<1xf32, #tpu.memory_space<smem>>, %arg6: memref<8x1xf32, #tpu.memory_space<vmem>>) attributes {dimension_semantics = [], scalar_prefetch = 0 : i64, scratch_operands = 0 : i64, tpu.core_type = #tpu.core_type<tc>} {
    %c0 = arith.constant 0 : index
    %c0_0 = arith.constant 0 : index
    %0 = vector.load %arg0[%c0, %c0_0] : memref<8x4xf32, #tpu.memory_space<vmem>>, vector<8x4xf32>
    %c0_1 = arith.constant 0 : index
    %c0_2 = arith.constant 0 : index
    %1 = vector.load %arg1[%c0_1, %c0_2] : memref<4x4xf32, #tpu.memory_space<vmem>>, vector<4x4xf32>
    %cst = arith.constant dense<0.000000e+00> : vector<8x4xf32>
    %2 = tpu.matmul %0, %1, %cst {dimension_numbers = #tpu.dot_dimension_numbers<[1], [1], [0], [0], [0, 0, 1, 0], [], []>} : vector<8x4xf32>, vector<4x4xf32>, vector<8x4xf32> -> vector<8x4xf32>
    %cst_3 = arith.constant dense<0.000000e+00> : vector<4xf32>
    %3 = vector.multi_reduction <add>, %2, %cst_3 [0] : vector<8x4xf32> to vector<4xf32>
    %4 = vector.shape_cast %3 : vector<4xf32> to vector<1x4xf32>
    %cst_4 = arith.constant 1.250000e-01 : f32
    %5 = vector.broadcast %cst_4 : f32 to vector<1x4xf32>
    %6 = arith.mulf %4, %5 : vector<1x4xf32>
    %7 = vector.broadcast %6 : vector<1x4xf32> to vector<8x4xf32>
    %8 = arith.subf %2, %7 : vector<8x4xf32>
    %9 = arith.mulf %8, %8 : vector<8x4xf32>
    %cst_5 = arith.constant dense<0.000000e+00> : vector<4xf32>
    %10 = vector.multi_reduction <add>, %9, %cst_5 [0] : vector<8x4xf32> to vector<4xf32>
    %11 = vector.shape_cast %10 : vector<4xf32> to vector<1x4xf32>
    %cst_6 = arith.constant 1.250000e-01 : f32
    %12 = vector.broadcast %cst_6 : f32 to vector<1x4xf32>
    %13 = arith.mulf %11, %12 : vector<1x4xf32>
    %cst_7 = arith.constant 1.000000e+00 : f32
    %14 = vector.broadcast %cst_7 : f32 to vector<1x4xf32>
    %15 = arith.addf %13, %14 : vector<1x4xf32>
    %16 = math.rsqrt %15 : vector<1x4xf32>
    %17 = vector.broadcast %16 : vector<1x4xf32> to vector<8x4xf32>
    %18 = arith.mulf %8, %17 : vector<8x4xf32>
    %19 = vector.extract_strided_slice %18 {offsets = [0, 0], sizes = [8, 1], strides = [1, 1]} : vector<8x4xf32> to vector<8x1xf32>
    %c0_8 = arith.constant 0 : index
    %20 = memref.load %arg2[%c0_8] : memref<4xf32, #tpu.memory_space<smem>>
    %21 = vector.broadcast %20 : f32 to vector<8x1xf32>
    %22 = arith.mulf %19, %21 : vector<8x1xf32>
    %c0_9 = arith.constant 0 : index
    %23 = memref.load %arg3[%c0_9] : memref<4xf32, #tpu.memory_space<smem>>
    %24 = vector.broadcast %23 : f32 to vector<8x1xf32>
    %25 = arith.addf %22, %24 : vector<8x1xf32>
    %c0_10 = arith.constant 0 : index
    %c0_11 = arith.constant 0 : index
    %26 = memref.load %arg4[%c0_10, %c0_11] : memref<1x4xf32, #tpu.memory_space<smem>>
    %27 = vector.broadcast %26 : f32 to vector<8x1xf32>
    %28 = arith.mulf %25, %27 : vector<8x1xf32>
    %29 = vector.extract_strided_slice %18 {offsets = [0, 1], sizes = [8, 1], strides = [1, 1]} : vector<8x4xf32> to vector<8x1xf32>
    %c1 = arith.constant 1 : index
    %30 = memref.load %arg2[%c1] : memref<4xf32, #tpu.memory_space<smem>>
    %31 = vector.broadcast %30 : f32 to vector<8x1xf32>
    %32 = arith.mulf %29, %31 : vector<8x1xf32>
    %c1_12 = arith.constant 1 : index
    %33 = memref.load %arg3[%c1_12] : memref<4xf32, #tpu.memory_space<smem>>
    %34 = vector.broadcast %33 : f32 to vector<8x1xf32>
    %35 = arith.addf %32, %34 : vector<8x1xf32>
    %c0_13 = arith.constant 0 : index
    %c1_14 = arith.constant 1 : index
    %36 = memref.load %arg4[%c0_13, %c1_14] : memref<1x4xf32, #tpu.memory_space<smem>>
    %37 = vector.broadcast %36 : f32 to vector<8x1xf32>
    %38 = arith.mulf %35, %37 : vector<8x1xf32>
    %39 = arith.addf %28, %38 : vector<8x1xf32>
    %40 = vector.extract_strided_slice %18 {offsets = [0, 2], sizes = [8, 1], strides = [1, 1]} : vector<8x4xf32> to vector<8x1xf32>
    %c2 = arith.constant 2 : index
    %41 = memref.load %arg2[%c2] : memref<4xf32, #tpu.memory_space<smem>>
    %42 = vector.broadcast %41 : f32 to vector<8x1xf32>
    %43 = arith.mulf %40, %42 : vector<8x1xf32>
    %c2_15 = arith.constant 2 : index
    %44 = memref.load %arg3[%c2_15] : memref<4xf32, #tpu.memory_space<smem>>
    %45 = vector.broadcast %44 : f32 to vector<8x1xf32>
    %46 = arith.addf %43, %45 : vector<8x1xf32>
    %c0_16 = arith.constant 0 : index
    %c2_17 = arith.constant 2 : index
    %47 = memref.load %arg4[%c0_16, %c2_17] : memref<1x4xf32, #tpu.memory_space<smem>>
    %48 = vector.broadcast %47 : f32 to vector<8x1xf32>
    %49 = arith.mulf %46, %48 : vector<8x1xf32>
    %50 = arith.addf %39, %49 : vector<8x1xf32>
    %51 = vector.extract_strided_slice %18 {offsets = [0, 3], sizes = [8, 1], strides = [1, 1]} : vector<8x4xf32> to vector<8x1xf32>
    %c3 = arith.constant 3 : index
    %52 = memref.load %arg2[%c3] : memref<4xf32, #tpu.memory_space<smem>>
    %53 = vector.broadcast %52 : f32 to vector<8x1xf32>
    %54 = arith.mulf %51, %53 : vector<8x1xf32>
    %c3_18 = arith.constant 3 : index
    %55 = memref.load %arg3[%c3_18] : memref<4xf32, #tpu.memory_space<smem>>
    %56 = vector.broadcast %55 : f32 to vector<8x1xf32>
    %57 = arith.addf %54, %56 : vector<8x1xf32>
    %c0_19 = arith.constant 0 : index
    %c3_20 = arith.constant 3 : index
    %58 = memref.load %arg4[%c0_19, %c3_20] : memref<1x4xf32, #tpu.memory_space<smem>>
    %59 = vector.broadcast %58 : f32 to vector<8x1xf32>
    %60 = arith.mulf %57, %59 : vector<8x1xf32>
    %61 = arith.addf %50, %60 : vector<8x1xf32>
    %c0_21 = arith.constant 0 : index
    %62 = memref.load %arg5[%c0_21] : memref<1xf32, #tpu.memory_space<smem>>
    %63 = vector.broadcast %62 : f32 to vector<8x1xf32>
    %64 = arith.addf %61, %63 : vector<8x1xf32>
    %c0_22 = arith.constant 0 : index
    %c0_23 = arith.constant 0 : index
    %65 = vector.load %arg6[%c0_22, %c0_23] : memref<8x1xf32, #tpu.memory_space<vmem>>, vector<8x1xf32>
    tpu.vector_store %arg6[%c0_22, %c0_23], %64 {strides = array<i32>} : memref<8x1xf32, #tpu.memory_space<vmem>>, vector<8x1xf32>,
    return
  }
}

</mosaic_0001>

<llo_original>
// kernel: tpu_custom_call.1
$region0: #{tpu_custom_call.1}
  #allocation0 [shape = 'u32[]', space=smem, size = 0x4, offset = 0x4, fixed_abs, tag = 'smem constant byte address 0x4 - core index']
  #allocation1 [shape = 'u32[144,128]{1,0:T(1,128)}', space=vmem, size = 0x12000, scoped, tag = 'internal scratch']
  #allocation2 [shape = 'f32[1]{0:T(128)S(6)}', space=smem, size = 0x200, scoped, tag = 'scoped memory for tpu_custom_call.1']
  %s0 = inlined_call_operand.vmem [shape: f32[8,4], index: 0, kind: input, shape index: {}]
  %s1 = inlined_call_operand.vmem [shape: f32[4,4], index: 1, kind: input, shape index: {}]
  %s2 = inlined_call_operand.vmem [shape: f32[4], index: 2, kind: input, shape index: {}]
  %s3 = inlined_call_operand.vmem [shape: f32[4], index: 3, kind: input, shape index: {}]
  %s4 = inlined_call_operand.vmem [shape: f32[1,4], index: 4, kind: input, shape index: {}]
  %s5 = inlined_call_operand.<no memory space> [shape: f32[1], index: 5, kind: input, shape index: {}]
  %s6 = inlined_call_operand.vmem [shape: f32[8,1], index: 6, kind: output, shape index: {}]
  %s7 = sld [smem:[#allocation0]]
  $region46: #{tpu_custom_call.1} parent=0
    _
  %s9 = ssub.s32 1, %s7
  %s10 = scalar_select 0, %s9, %s7
  %11 = sst [smem:[#allocation2]] %s5
  $region1: #{tpu_custom_call.1} parent=0
    #allocation3 [shape = 'u8[512]{0}', space=smem, size = 0x200, scoped, tag = 'input window, operand 2, single buffered']
    #allocation4 [shape = 's32[1]{0}', space=sflag, size = 0x4, scoped, tag = 'scoped memory for tpu_custom_call.1']
    #allocation5 [shape = 'u8[512]{0}', space=smem, size = 0x200, scoped, tag = 'input window, operand 3, single buffered']
    #allocation6 [shape = 's32[1]{0}', space=sflag, size = 0x4, scoped, tag = 'scoped memory for tpu_custom_call.1']
    #allocation7 [shape = 'u8[512]{0}', space=smem, size = 0x200, scoped, tag = 'input window, operand 4, single buffered']
    %12 = vsyncpa [#allocation4], 0
    %13 = vsyncpa [#allocation6], 0
    // Predicated region
    $region2: #{tpu_custom_call.1} parent=1 // pred_check
      _
    $region3: #{tpu_custom_call.1} parent=1 // pred_check_branch
      %15 = sbr.rel (0) target = $region5
    $region4: #{tpu_custom_call.1} parent=1 // pred_region
      _
    $region5: #{tpu_custom_call.1} parent=1 // pred_fallthru
      _
    // Predicated region
    $region6: #{tpu_custom_call.1} parent=1 // pred_check
      _
    $region7: #{tpu_custom_call.1} parent=1 // pred_check_branch
      %17 = sbr.rel (0) target = $region9
    $region8: #{tpu_custom_call.1} parent=1 // pred_region
      _
    $region9: #{tpu_custom_call.1} parent=1 // pred_fallthru
      _
    // Predicated region
    $region10: #{tpu_custom_call.1} parent=1 // pred_check
      _
    $region11: #{tpu_custom_call.1} parent=1 // pred_check_branch
      %19 = sbr.rel (0) target = $region13
    $region12: #{tpu_custom_call.1} parent=1 // pred_region
      %s21 = ssub.s32 16, 16
      %22 = vsyncadd [#allocation4], %s21
      %s24 = sshll.u32 %s2, 4
      %s25 = int_to_ptr.vmem [resolvable:$true] %s24
      %27 = dma.vmem_to_smem %s25, 16, [#allocation3], [#allocation4]
    $region13: #{tpu_custom_call.1} parent=1 // pred_fallthru
      _
    // Predicated region
    $region14: #{tpu_custom_call.1} parent=1 // pred_check
      _
    $region15: #{tpu_custom_call.1} parent=1 // pred_check_branch
      %29 = sbr.rel (0) target = $region17
    $region16: #{tpu_custom_call.1} parent=1 // pred_region
      %s31 = ssub.s32 16, 16
      %32 = vsyncadd [#allocation6], %s31
      %s34 = sshll.u32 %s3, 4
      %s35 = int_to_ptr.vmem [resolvable:$true] %s34
      %37 = dma.vmem_to_smem %s35, 16, [#allocation5], [#allocation6]
    $region17: #{tpu_custom_call.1} parent=1 // pred_fallthru
      _
    // Predicated region
    $region18: #{tpu_custom_call.1} parent=1 // pred_check
      _
    $region19: #{tpu_custom_call.1} parent=1 // pred_check_branch
      %39 = sbr.rel (0) target = $region21
    $region20: #{tpu_custom_call.1} parent=1 // pred_region
      %s41 = ssub.s32 16, 16
      %42 = vsyncadd [#allocation6], %s41
      %s44 = sshll.u32 %s4, 4
      %s45 = int_to_ptr.vmem [resolvable:$true] %s44
      %47 = dma.vmem_to_smem %s45, 16, [#allocation7], [#allocation6]
    $region21: #{tpu_custom_call.1} parent=1 // pred_fallthru
      _
    // Predicated region
    $region22: #{tpu_custom_call.1} parent=1 // pred_check
      _
    $region23: #{tpu_custom_call.1} parent=1 // pred_check_branch
      %49 = sbr.rel (0) target = $region25
    $region24: #{tpu_custom_call.1} parent=1 // pred_region
      _
    $region25: #{tpu_custom_call.1} parent=1 // pred_fallthru
      _
    // Predicated region
    $region26: #{tpu_custom_call.1} parent=1 // pred_check
      _
    $region27: #{tpu_custom_call.1} parent=1 // pred_check_branch
      %51 = sbr.rel (0) target = $region29
    $region28: #{tpu_custom_call.1} parent=1 // pred_region
      %52 = dma.done [#allocation4], 16
    $region29: #{tpu_custom_call.1} parent=1 // pred_fallthru
      _
    // Predicated region
    $region30: #{tpu_custom_call.1} parent=1 // pred_check
      _
    $region31: #{tpu_custom_call.1} parent=1 // pred_check_branch
      %54 = sbr.rel (0) target = $region33
    $region32: #{tpu_custom_call.1} parent=1 // pred_region
      %55 = dma.done [#allocation6], 16
    $region33: #{tpu_custom_call.1} parent=1 // pred_fallthru
      _
    // Predicated region
    $region34: #{tpu_custom_call.1} parent=1 // pred_check
      _
    $region35: #{tpu_custom_call.1} parent=1 // pred_check_branch
      %57 = sbr.rel (0) target = $region37
    $region36: #{tpu_custom_call.1} parent=1 // pred_region
      %58 = dma.done [#allocation6], 16
    $region37: #{tpu_custom_call.1} parent=1 // pred_fallthru
      _
    %59 = sfence
    %v60 = vld [vmem:[%s0] sm:$0xff]
    %v61 = vld [vmem:[%s1] sm:$0xf]
    %vm62 = vcmask 31744
    %v64 = vsel %vm62, %v60, 0
    %v67 = vsel %vm62, %v61, 0
    %69 = vmatprep.subr.mxu0 0.0
    %70 = vmatpush1.xpose.msra.mxu0 0.0
    %71 = vmatprep.subr.mxu0 0.0
    %72 = vmatpush1.xpose.msra.mxu0 0.0
    %73 = vmatprep.subr.mxu0 0.0
    %74 = vmatpush1.xpose.msra.mxu0 0.0
    %75 = vmatprep.subr.mxu0 0.0
    %76 = vmatpush1.xpose.msra.mxu0 0.0
    %77 = vmatprep.subr.mxu0 0.0
    %78 = vmatpush1.xpose.msra.mxu0 0.0
    %79 = vmatprep.subr.mxu0 0.0
    %80 = vmatpush1.xpose.msra.mxu0 0.0
    %81 = vmatprep.subr.mxu0 0.0
    %82 = vmatpush1.xpose.msra.mxu0 0.0
    %83 = vmatprep.subr.mxu0 0.0
    %84 = vmatpush1.xpose.msra.mxu0 0.0
    %85 = vmatprep.subr.mxu0 0.0
    %86 = vmatpush1.xpose.msra.mxu0 0.0
    %87 = vmatprep.subr.mxu0 0.0
    %88 = vmatpush1.xpose.msra.mxu0 0.0
    %89 = vmatprep.subr.mxu0 0.0
    %90 = vmatpush1.xpose.msra.mxu0 0.0
    %91 = vmatprep.subr.mxu0 0.0
    %92 = vmatpush1.xpose.msra.mxu0 0.0
    %93 = vmatprep.subr.mxu0 0.0
    %94 = vmatpush1.xpose.msra.mxu0 0.0
    %95 = vmatprep.subr.mxu0 0.0
    %96 = vmatpush1.xpose.msra.mxu0 0.0
    %97 = vmatprep.subr.mxu0 0.0
    %98 = vmatpush1.xpose.msra.mxu0 0.0
    %99 = vmatprep.subr.mxu0 0.0
    %100 = vmatpush1.xpose.msra.mxu0 %v67
    %101 = vmatprep.subr.mxu0 0.0
    %102 = vmatpush2.xpose.msra.mxu0 0.0
    %103 = vmatprep.subr.mxu0 0.0
    %104 = vmatpush2.xpose.msra.mxu0 0.0
    %105 = vmatprep.subr.mxu0 0.0
    %106 = vmatpush2.xpose.msra.mxu0 0.0
    %107 = vmatprep.subr.mxu0 0.0
    %108 = vmatpush2.xpose.msra.mxu0 0.0
    %109 = vmatprep.subr.mxu0 0.0
    %110 = vmatpush2.xpose.msra.mxu0 0.0
    %111 = vmatprep.subr.mxu0 0.0
    %112 = vmatpush2.xpose.msra.mxu0 0.0
    %113 = vmatprep.subr.mxu0 0.0
    %114 = vmatpush2.xpose.msra.mxu0 0.0
    %115 = vmatprep.subr.mxu0 0.0
    %116 = vmatpush2.xpose.msra.mxu0 0.0
    %117 = vmatprep.subr.mxu0 0.0
    %118 = vmatpush2.xpose.msra.mxu0 0.0
    %119 = vmatprep.subr.mxu0 0.0
    %120 = vmatpush2.xpose.msra.mxu0 0.0
    %121 = vmatprep.subr.mxu0 0.0
    %122 = vmatpush2.xpose.msra.mxu0 0.0
    %123 = vmatprep.subr.mxu0 0.0
    %124 = vmatpush2.xpose.msra.mxu0 0.0
    %125 = vmatprep.subr.mxu0 0.0
    %126 = vmatpush2.xpose.msra.mxu0 0.0
    %127 = vmatprep.subr.mxu0 0.0
    %128 = vmatpush2.xpose.msra.mxu0 0.0
    %129 = vmatprep.subr.mxu0 0.0
    %130 = vmatpush2.xpose.msra.mxu0 0.0
    %131 = vmatprep.subr.mxu0 0.0
    %132 = vmatpush2.xpose.msra.mxu0 0.0
    %133 = vmatprep.mubr.f32.mxu0 0.0
    %134 = vmatmul.mubr.f32.gmra.mxu0 %v64
    %v135 = vpop.f32.mrf.mxu0
    %v136 = vadd.f32 0.0, %v135
    %v137 = vpop.f32.mrf.mxu0
    %138 = vdwg.mxu0
    %v139 = vsel %vm62, %v136, 0.0
    %v140 = vrot.slane %v139, 4
    %v141 = vadd.f32 %v139, %v140
    %v142 = vrot.slane %v141, 2
    %v143 = vadd.f32 %v141, %v142
    %v144 = vrot.slane %v143, 1
    %v145 = vadd.f32 %v143, %v144
    %v146 = vmul.f32 %v145, 0.125
    %v147 = vsub.f32 %v136, %v146
    %v148 = vmul.f32 %v147, %v147
    %v149 = vsel %vm62, %v148, 0.0
    %v150 = vrot.slane %v149, 4
    %v151 = vadd.f32 %v149, %v150
    %v152 = vrot.slane %v151, 2
    %v153 = vadd.f32 %v151, %v152
    %v154 = vrot.slane %v153, 1
    %v155 = vadd.f32 %v153, %v154
    %v156 = vmul.f32 %v155, 0.125
    %v157 = vadd.f32 %v156, 1.0
    %v158 = vrsqrt.pop %v157
    %v159 = vmul.f32 %v147, %v158
    %s160 = sld [smem:[#allocation3]]
    %v161 = vstv %s160
    %v162 = vmul.f32 %v159, %v161
    %s163 = sld [smem:[#allocation5]]
    %v164 = vstv %s163
    %v165 = vadd.f32 %v162, %v164
    %s166 = sld [smem:[#allocation7]]
    %v167 = vstv %s166
    %v168 = vmul.f32 %v165, %v167
    %s169 = sld [smem:[#allocation3 + $0x1]]
    %v170 = vstv %s169
    %v171 = vmul.f32 %v159, %v170
    %s172 = sld [smem:[#allocation5 + $0x1]]
    %v173 = vstv %s172
    %v174 = vadd.f32 %v171, %v173
    %s175 = sld [smem:[#allocation7 + $0x1]]
    %v176 = vstv %s175
    %v177 = vmul.f32 %v174, %v176
    %179 = vrot.lane.b32.xlu0 %v177, 127
    %v180 = vpop.permute.xlu0 %179
    %v182 = vadd.f32 %v168, %v180
    %s183 = sld [smem:[#allocation3 + $0x2]]
    %v184 = vstv %s183
    %v185 = vmul.f32 %v159, %v184
    %s186 = sld [smem:[#allocation5 + $0x2]]
    %v187 = vstv %s186
    %v188 = vadd.f32 %v185, %v187
    %s189 = sld [smem:[#allocation7 + $0x2]]
    %v190 = vstv %s189
    %v191 = vmul.f32 %v188, %v190
    %193 = vrot.lane.b32.xlu0 %v191, 126
    %v194 = vpop.permute.xlu0 %193
    %v196 = vadd.f32 %v182, %v194
    %s197 = sld [smem:[#allocation3 + $0x3]]
    %v198 = vstv %s197
    %v199 = vmul.f32 %v159, %v198
    %s200 = sld [smem:[#allocation5 + $0x3]]
    %v201 = vstv %s200
    %v202 = vadd.f32 %v199, %v201
    %s203 = sld [smem:[#allocation7 + $0x3]]
    %v204 = vstv %s203
    %v205 = vmul.f32 %v202, %v204
    %207 = vrot.lane.b32.xlu0 %v205, 125
    %v208 = vpop.permute.xlu0 %207
    %v210 = vadd.f32 %v196, %v208
    %s211 = sld [smem:[#allocation2]]
    %v212 = vstv %s211
    %v213 = vadd.f32 %v210, %v212
    %vm214 = vcmask 7168
    %215 = vst.msk [vmem:[%s6] sm:$0xff] %vm214, %v213
    // Predicated region
    $region38: #{tpu_custom_call.1} parent=1 // pred_check
      _
    $region39: #{tpu_custom_call.1} parent=1 // pred_check_branch
      %217 = sbr.rel (0) target = $region41
    $region40: #{tpu_custom_call.1} parent=1 // pred_region
      _
    $region41: #{tpu_custom_call.1} parent=1 // pred_fallthru
      _
    // Predicated region
    $region42: #{tpu_custom_call.1} parent=1 // pred_check
      _
    $region43: #{tpu_custom_call.1} parent=1 // pred_check_branch
      %219 = sbr.rel (0) target = $region45
    $region44: #{tpu_custom_call.1} parent=1 // pred_region
      _
    $region45: #{tpu_custom_call.1} parent=1 // pred_fallthru
      _
    %220 = vsyncpa [#allocation4], 1
    %221 = vsyncpa [#allocation6], 1

</llo_original>
